<compile_context>
chip_gen: v6e
topology: v6e:2x2x1
jax: 0.10.0
libtpu: 0.0.40
codegen_flags: <defaults>
</compile_context>

<pallas_src>
import functools
import math

import jax
import jax.numpy as jnp
import numpy as np
from jax import lax
from jax.experimental import pallas as pl
from jax.experimental.pallas import tpu as pltpu

LRELU_SLOPE = 0.1
VMEM_LIMIT = 32 * 1024 * 1024  # safe on v5e/v6e (128 MiB) and v7x (64 MiB physical)


def get_padding(kernel_size: int, dilation: int = 1) -> int:
    return (kernel_size * dilation - dilation) // 2


def round_up(x: int, m: int) -> int:
    return (x + m - 1) // m * m


# ----------------------------------------------------------------------------
# Kernel 1: tiled matmul with fused bias + leaky-relu (bf16 MXU, f32 accum).
# Used (via im2col) for conv_post and as the generic fallback path.
# ----------------------------------------------------------------------------
def _matmul_bias_act_kernel(a_ref, b_ref, bias_ref, o_ref, acc_ref, *,
                            apply_lrelu: bool, slope: float):
    @pl.when(pl.program_id(2) == 0)
    def _():
        acc_ref[...] = jnp.zeros_like(acc_ref)

    acc_ref[...] += jnp.dot(a_ref[...], b_ref[...],
                            preferred_element_type=jnp.float32)

    @pl.when(pl.program_id(2) == pl.num_programs(2) - 1)
    def _():
        y = acc_ref[...] + bias_ref[...]
        if apply_lrelu:
            y = jnp.where(y > 0, y, slope * y)
        o_ref[...] = y.astype(o_ref.dtype)


def matmul_bias_act(a, w, bias, *, apply_lrelu, out_dtype=jnp.float32,
                    slope=LRELU_SLOPE):
    """a: (M, K), w: (K, N), bias: (N,) -> (M, N). bf16 MXU operands."""
    M, Kd = a.shape
    _, Nd = w.shape

    Kp = round_up(Kd, 128)
    # Largest 128-multiple <= 1024 that divides Kp (collapses the reduction
    # grid axis to a single step whenever possible, e.g. Kp=640 -> tk=640).
    tk = next(t for t in range(min(Kp, 1024), 0, -128) if Kp % t == 0)
    Np = round_up(Nd, 128)
    tn = 256 if Np % 256 == 0 else 128
    tm = min(512, round_up(M, 16))
    Mp = round_up(M, tm)

    a_p = jnp.pad(a.astype(jnp.bfloat16), ((0, Mp - M), (0, Kp - Kd)))
    w_p = jnp.pad(w, ((0, Kp - Kd), (0, Np - Nd))).astype(jnp.bfloat16)
    bias_p = jnp.pad(bias, (0, Np - Nd)).reshape(1, Np).astype(jnp.float32)

    grid = (Mp // tm, Np // tn, Kp // tk)
    out_bytes = jnp.dtype(out_dtype).itemsize
    cost = pl.CostEstimate(
        flops=2 * Mp * Kp * Np,
        transcendentals=0,
        bytes_accessed=int(Mp * Kp * 2 * grid[1] + Kp * Np * 2 * grid[0]
                           + Mp * Np * out_bytes))

    kernel = functools.partial(_matmul_bias_act_kernel,
                               apply_lrelu=apply_lrelu, slope=slope)
    out = pl.pallas_call(
        kernel,
        out_shape=jax.ShapeDtypeStruct((Mp, Np), out_dtype),
        grid_spec=pltpu.PrefetchScalarGridSpec(
            num_scalar_prefetch=0,
            grid=grid,
            in_specs=[
                pl.BlockSpec((tm, tk), lambda i, j, k: (i, k)),
                pl.BlockSpec((tk, tn), lambda i, j, k: (k, j)),
                pl.BlockSpec((1, tn), lambda i, j, k: (0, j)),
            ],
            out_specs=pl.BlockSpec((tm, tn), lambda i, j, k: (i, j)),
            scratch_shapes=[pltpu.VMEM((tm, tn), jnp.float32)],
        ),
        compiler_params=pltpu.CompilerParams(
            dimension_semantics=("parallel", "parallel", "arbitrary"),
            vmem_limit_bytes=VMEM_LIMIT),
        cost_estimate=cost,
    )(a_p, w_p, bias_p)
    return out[:M, :Nd]


def conv_im2col(x, w, bias, *, stride, pad, apply_lrelu, out_dtype=jnp.float32):
    """x: (N', H, C_in); w: (K, C_in, C_out). im2col (bf16) + matmul kernel."""
    Nb, H, Cin = x.shape
    K, _, Cout = w.shape
    x_p = jnp.pad(x.astype(jnp.bfloat16), ((0, 0), (pad, pad), (0, 0)))
    Hout = (H + 2 * pad - K) // stride + 1
    starts = jnp.arange(Hout) * stride
    taps = [x_p[:, starts + k, :] for k in range(K)]             # K x (N', Hout, Cin)
    a = jnp.stack(taps, axis=2).reshape(Nb * Hout, K * Cin)      # (M, K*Cin)
    y = matmul_bias_act(a, w.reshape(K * Cin, Cout), bias,
                        apply_lrelu=apply_lrelu, out_dtype=out_dtype)
    return y.reshape(Nb, Hout, Cout)


# ----------------------------------------------------------------------------
# Kernel 2: first layer (C_in == 1) as a pure VPU broadcast-MAC kernel.
# Avoids padding K=5 -> 128 and C_out=32 -> 128 for the MXU path.
# ----------------------------------------------------------------------------
def _conv_cin1_kernel(a_ref, w_ref, bias_ref, o_ref, *, ktaps, apply_lrelu, slope):
    a = a_ref[...]                      # (tm, Kp)  f32
    w = w_ref[...]                      # (Kp, C_out) f32
    acc = bias_ref[...]                 # (1, C_out) -> broadcasts to (tm, C_out)
    for k in range(ktaps):
        acc = acc + a[:, k:k + 1] * w[k:k + 1, :]
    if apply_lrelu:
        acc = jnp.where(acc > 0, acc, slope * acc)
    o_ref[...] = acc.astype(o_ref.dtype)


def conv_cin1(x, w, bias, *, stride, pad, apply_lrelu, out_dtype=jnp.float32,
              slope=LRELU_SLOPE):
    Nb, H, _ = x.shape
    K, _, Cout = w.shape
    x_p = jnp.pad(x[..., 0], ((0, 0), (pad, pad)))               # (N', H + 2p)
    Hout = (H + 2 * pad - K) // stride + 1
    starts = jnp.arange(Hout) * stride
    taps = [x_p[:, starts + k] for k in range(K)]                # K x (N', Hout)
    a = jnp.stack(taps, axis=-1).reshape(Nb * Hout, K)           # (M, K)
    M = Nb * Hout
    Kp = round_up(K, 8)
    tm = min(512, round_up(M, 8))
    Mp = round_up(M, tm)
    a_p = jnp.pad(a, ((0, Mp - M), (0, Kp - K)))
    w_p = jnp.pad(w.reshape(K, Cout), ((0, Kp - K), (0, 0)))
    b_p = bias.reshape(1, Cout)

    kernel = functools.partial(_conv_cin1_kernel, ktaps=K,
                               apply_lrelu=apply_lrelu, slope=slope)
    out = pl.pallas_call(
        kernel,
        out_shape=jax.ShapeDtypeStruct((Mp, Cout), out_dtype),
        grid_spec=pltpu.PrefetchScalarGridSpec(
            num_scalar_prefetch=0,
            grid=(Mp // tm,),
            in_specs=[
                pl.BlockSpec((tm, Kp), lambda i: (i, 0)),
                pl.BlockSpec((Kp, Cout), lambda i: (0, 0)),
                pl.BlockSpec((1, Cout), lambda i: (0, 0)),
            ],
            out_specs=pl.BlockSpec((tm, Cout), lambda i: (i, 0)),
        ),
        compiler_params=pltpu.CompilerParams(
            dimension_semantics=("parallel",),
            vmem_limit_bytes=VMEM_LIMIT),
    )(a_p, w_p, b_p)
    return out[:M].reshape(Nb, Hout, Cout)


# ----------------------------------------------------------------------------
# Kernel 3: direct stride-1 conv (no HBM im2col, no selection matmuls).
# The bf16 activation block stays resident in VMEM; each tap k is a static
# row-slice of the block, and all bn samples are batched into a single
# (bn*Hor, tck) x (tck, tn) MXU matmul per tap / per C_in tile.  Reduction over
# C_in tiles runs on the last ("arbitrary") grid axis with an f32 accumulator.
# ----------------------------------------------------------------------------
def _conv_direct_kernel(x_ref, w_ref, bias_ref, o_ref, acc_ref, *,
                        ktaps, hor, apply_lrelu, slope):
    c = pl.program_id(2)

    @pl.when(c == 0)
    def _():
        acc_ref[...] = jnp.zeros_like(acc_ref)

    bn, _, tck = x_ref.shape
    m = bn * hor
    for k in range(ktaps):
        # Static tap slice (stride-1 conv): rows [k, k+hor) of every sample.
        xk = x_ref[:, k:k + hor, :].reshape(m, tck)              # bf16
        acc_ref[...] += jnp.dot(xk, w_ref[k],
                                preferred_element_type=jnp.float32)

    @pl.when(c == pl.num_programs(2) - 1)
    def _():
        y = acc_ref[...] + bias_ref[...]
        if apply_lrelu:
            y = jnp.where(y > 0, y, slope * y)
        o_ref[...] = y.astype(o_ref.dtype)


def conv_direct(x, w, bias, *, pad_lo, pad_hi, apply_lrelu,
                out_dtype=jnp.float32, slope=LRELU_SLOPE):
    """Stride-1 conv.  x: (N', Hin, Cin) (zero-padded by pad_lo/pad_hi along H)."""
    Nb, Hin, Cin = x.shape
    K, _, Cout = w.shape
    Hout = Hin + pad_lo + pad_hi - K + 1
    assert Hout >= 1
    Hor = round_up(Hout, 16)              # 16 => bf16-tile-aligned row merges
    Hr = round_up(Hor + K - 1, 16)
    Cpi = round_up(Cin, 128)
    tck = next(t for t in range(min(Cpi, 512), 0, -128) if Cpi % t == 0)
    Cpo = round_up(Cout, 128)
    tn = 256 if Cpo % 256 == 0 else 128

    # Samples per block: target >= 256 output rows per matmul, bounded by VMEM;
    # keep >= 2 blocks on a parallel grid axis for megacore when possible.
    bn = 1
    if Hor < 256:
        bn = min(Nb, max(1, 256 // Hor))
    bn = max(1, min(bn, (2 << 20) // (Hr * tck * 2)))
    if Cpo // tn < 2 and Nb >= 2:
        bn = min(bn, max(1, Nb // 2))
    Npp = round_up(Nb, bn)

    x_p = jnp.pad(x.astype(jnp.bfloat16),
                  ((0, Npp - Nb), (pad_lo, Hr - Hin - pad_lo), (0, Cpi - Cin)))
    w_p = jnp.pad(w, ((0, 0), (0, Cpi - Cin), (0, Cpo - Cout))).astype(jnp.bfloat16)
    b_p = jnp.pad(bias, (0, Cpo - Cout)).reshape(1, Cpo).astype(jnp.float32)

    grid = (Npp // bn, Cpo // tn, Cpi // tck)
    out_bytes = jnp.dtype(out_dtype).itemsize
    cost = pl.CostEstimate(
        flops=2 * Npp * Hor * K * Cpi * Cpo,
        transcendentals=0,
        bytes_accessed=int(Npp * Hr * Cpi * 2 * grid[1]
                           + K * Cpi * Cpo * 2 * grid[0]
                           + Npp * Hor * Cpo * out_bytes))

    kernel = functools.partial(_conv_direct_kernel, ktaps=K, hor=Hor,
                               apply_lrelu=apply_lrelu, slope=slope)
    out = pl.pallas_call(
        kernel,
        out_shape=jax.ShapeDtypeStruct((Npp * Hor, Cpo), out_dtype),
        grid_spec=pltpu.PrefetchScalarGridSpec(
            num_scalar_prefetch=0,
            grid=grid,
            in_specs=[
                pl.BlockSpec((bn, Hr, tck), lambda i, j, c: (i, 0, c)),
                pl.BlockSpec((K, tck, tn), lambda i, j, c: (0, c, j)),
                pl.BlockSpec((1, tn), lambda i, j, c: (0, j)),
            ],
            out_specs=pl.BlockSpec((bn * Hor, tn), lambda i, j, c: (i, j)),
            scratch_shapes=[pltpu.VMEM((bn * Hor, tn), jnp.float32)],
        ),
        compiler_params=pltpu.CompilerParams(
            dimension_semantics=("parallel", "parallel", "arbitrary"),
            vmem_limit_bytes=VMEM_LIMIT),
        cost_estimate=cost,
    )(x_p, w_p, b_p)
    return out.reshape(Npp, Hor, Cpo)[:Nb, :Hout, :Cout]


# ----------------------------------------------------------------------------
# Stride-s conv via row-grouping: a stride-s K-tap conv equals a stride-1
# conv with ceil(K/s) group-taps over s*C_in grouped channels.  The grouping
# is a free XLA reshape of the zero-padded activation (no im2col duplication).
# ----------------------------------------------------------------------------
def _group_weights(w, stride):
    K, Cin, Cout = w.shape
    Kg = (K - 1) // stride + 1
    wg = jnp.zeros((Kg, stride * Cin, Cout), w.dtype)
    for j in range(Kg):
        for r in range(stride):
            k = j * stride + r
            if k < K:
                wg = wg.at[j, r * Cin:(r + 1) * Cin, :].set(w[k])
    return wg


def conv_strided_grouped(x, w, bias, *, stride, pad, apply_lrelu,
                         out_dtype=jnp.float32):
    Nb, H, Cin = x.shape
    K, _, Cout = w.shape
    Hout = (H + 2 * pad - K) // stride + 1
    Kg = (K - 1) // stride + 1
    G = Hout + Kg - 1
    pad_hi = stride * G - H - pad
    assert pad_hi >= 0
    x_p = jnp.pad(x.astype(jnp.bfloat16), ((0, 0), (pad, pad_hi), (0, 0)))
    xg = x_p.reshape(Nb, G, stride * Cin)        # free reshape (no duplication)
    wg = _group_weights(w, stride)
    return conv_direct(xg, wg, bias, pad_lo=0, pad_hi=0,
                       apply_lrelu=apply_lrelu, out_dtype=out_dtype)


# ----------------------------------------------------------------------------
# Layer dispatcher
# ----------------------------------------------------------------------------
def _direct_fits(Hout, cin_eff, ktaps):
    Hor = round_up(max(Hout, 1), 16)
    Hr = round_up(Hor + ktaps - 1, 16)
    Cpi = round_up(cin_eff, 128)
    tck = next(t for t in range(min(Cpi, 512), 0, -128) if Cpi % t == 0)
    # per-sample input block and f32 accumulator must stay comfortably in VMEM
    return (Hr * tck * 2) <= (2 << 20) and (Hor * 256 * 4) <= (4 << 20)


def conv_layer(x, w, bias, *, stride, pad, apply_lrelu, out_dtype=jnp.float32):
    K, Cin, Cout = w.shape
    if Cin == 1:
        return conv_cin1(x, w, bias, stride=stride, pad=pad,
                         apply_lrelu=apply_lrelu, out_dtype=out_dtype)
    H = x.shape[1]
    Hout = (H + 2 * pad - K) // stride + 1
    if Cout >= 128 and Hout >= 1:
        if stride == 1 and _direct_fits(Hout, Cin, K):
            try:
                return conv_direct(x, w, bias, pad_lo=pad, pad_hi=pad,
                                   apply_lrelu=apply_lrelu, out_dtype=out_dtype)
            except Exception:
                pass  # fall back to the im2col path below
        elif stride > 1:
            Kg = (K - 1) // stride + 1
            if (_direct_fits(Hout, stride * Cin, Kg)
                    and stride * (Hout + Kg - 1) - H - pad >= 0):
                try:
                    return conv_strided_grouped(
                        x, w, bias, stride=stride, pad=pad,
                        apply_lrelu=apply_lrelu, out_dtype=out_dtype)
                except Exception:
                    pass
    return conv_im2col(x, w, bias, stride=stride, pad=pad,
                       apply_lrelu=apply_lrelu, out_dtype=out_dtype)


# ----------------------------------------------------------------------------
# Parameter init (deterministic, synthetic weights)
# ----------------------------------------------------------------------------
LAYER_SPECS = [
    # (C_in, C_out, kernel, stride, pad)
    (1, 32, 5, 3, get_padding(5, 1)),
    (32, 128, 5, 3, get_padding(5, 1)),
    (128, 512, 5, 3, get_padding(5, 1)),
    (512, 1024, 5, 3, get_padding(5, 1)),
    (1024, 1024, 5, 1, get_padding(5, 1)),
]
POST_SPEC = (1024, 1, 3, 1, 1)


def init_params(key):
    params = {"convs": [], "post": None}
    specs = LAYER_SPECS + [POST_SPEC]
    keys = jax.random.split(key, 2 * len(specs))
    for idx, (c_in, c_out, k, stride, pad) in enumerate(specs):
        wk, bk = keys[2 * idx], keys[2 * idx + 1]
        scale = 1.0 / math.sqrt(c_in * k)
        w = jax.random.normal(wk, (k, c_in, c_out), jnp.float32) * scale
        b = jax.random.normal(bk, (c_out,), jnp.float32) * 0.01
        entry = (w, b, stride, pad)
        if idx < len(LAYER_SPECS):
            params["convs"].append(entry)
        else:
            params["post"] = entry
    return params


# ----------------------------------------------------------------------------
# DiscriminatorP forward (Pallas path)
# ----------------------------------------------------------------------------
def _to_nchw(x, b, period):
    # x: (b*period, H, C) -> (b, C, H, period)  (PyTorch NCHW feature maps, f32)
    Nb, H, C = x.shape
    return jnp.transpose(x.reshape(b, period, H, C), (0, 3, 2, 1)).astype(jnp.float32)


def discriminator_p_forward(x, params, period: int):
    b, c, t = x.shape
    if t % period != 0:
        n_pad = period - t % period
        x = jnp.pad(x, ((0, 0), (0, 0), (0, n_pad)), mode="reflect")
        t = t + n_pad
    x = x.reshape(b, c, t // period, period)                          # NCHW
    # kernel layout: channels-last (b*period, H, C); kept between layers (bf16).
    x = jnp.transpose(x, (0, 3, 2, 1)).reshape(b * period, t // period, c)

    fmap_cl = []
    for (w, bias, stride, pad) in params["convs"]:
        x = conv_layer(x, w, bias, stride=stride, pad=pad,
                       apply_lrelu=True, out_dtype=jnp.bfloat16)
        fmap_cl.append(x)
    w, bias, stride, pad = params["post"]
    x = conv_layer(x, w, bias, stride=stride, pad=pad,
                   apply_lrelu=False, out_dtype=jnp.float32)
    fmap_cl.append(x)

    # NCHW / f32 conversion only at the API boundary.
    fmap = [_to_nchw(f, b, period) for f in fmap_cl]
    out = fmap[-1].reshape(b, -1)                                     # torch.flatten(x, 1, -1)
    return out, fmap


# ----------------------------------------------------------------------------
# Pure-JAX (XLA conv) references.
#   mirror_bf16=True mirrors the kernel's bf16-operand / f32-accumulate math
#   (tight check); mirror_bf16=False is the original module's pure-f32 math
#   (loose sanity check -- bf16 introduces <~1% deviation).
# ----------------------------------------------------------------------------
def discriminator_p_ref(x, params, period: int, *, mirror_bf16: bool):
    b, c, t = x.shape
    if t % period != 0:
        n_pad = period - t % period
        x = jnp.pad(x, ((0, 0), (0, 0), (0, n_pad)), mode="reflect")
        t = t + n_pad
    x = x.reshape(b, c, t // period, period)

    def conv(x, w, bias, stride, pad):
        cast = mirror_bf16 and w.shape[1] > 1   # layer 1 (C_in=1) stays f32
        xc = x.astype(jnp.bfloat16) if cast else x
        wc = w.astype(jnp.bfloat16) if cast else w
        w_oihw = jnp.transpose(wc, (2, 1, 0))[..., None]              # (O, I, K, 1)
        y = lax.conv_general_dilated(
            xc, w_oihw, window_strides=(stride, 1),
            padding=[(pad, pad), (0, 0)],
            dimension_numbers=("NCHW", "OIHW", "NCHW"),
            preferred_element_type=jnp.float32)
        return y + bias[None, :, None, None]

    fmap = []
    for (w, bias, stride, pad) in params["convs"]:
        x = conv(x, w, bias, stride, pad)
        x = jnp.where(x > 0, x, LRELU_SLOPE * x)
        fmap.append(x)
    w, bias, stride, pad = params["post"]
    x = conv(x, w, bias, stride, pad)
    fmap.append(x)
    return x.reshape(b, -1), fmap


if __name__ == "__main__":
    key = jax.random.PRNGKey(0)
    pkey, xkey = jax.random.split(key)
    params = init_params(pkey)

    period = 4
    x = jax.random.normal(xkey, (2, 1, 62), jnp.float32)    # (b, c, t); exercises reflect pad

    out, fmap = discriminator_p_forward(x, params, period)
    out = jax.block_until_ready(out)
    fmap = jax.block_until_ready(fmap)

    # Tight check: same bf16-operand / f32-accumulate math via XLA convs.
    out_ref, fmap_ref = discriminator_p_ref(x, params, period, mirror_bf16=True)
    # Loose check: original pure-f32 module semantics.
    out_f32, fmap_f32 = discriminator_p_ref(x, params, period, mirror_bf16=False)

    assert out.shape == out_ref.shape, (out.shape, out_ref.shape)
    assert len(fmap) == len(fmap_ref) == 6
    for a, r, r32 in zip(fmap, fmap_ref, fmap_f32):
        assert a.shape == r.shape, (a.shape, r.shape)
        np.testing.assert_allclose(np.asarray(a), np.asarray(r), rtol=2e-2, atol=2e-2)
        np.testing.assert_allclose(np.asarray(a), np.asarray(r32), rtol=1e-1, atol=1e-1)
    np.testing.assert_allclose(np.asarray(out), np.asarray(out_ref), rtol=2e-2, atol=2e-2)
    np.testing.assert_allclose(np.asarray(out), np.asarray(out_f32), rtol=1e-1, atol=1e-1)

    print("KERNEL_OK")
</pallas_src>

<mosaic_0001>
module attributes {stable_mosaic.version = 11 : i64} {
  func.func @_conv_cin1_kernel(%arg0: i32, %arg1: memref<48x8xf32, #tpu.memory_space<vmem>>, %arg2: memref<8x32xf32, #tpu.memory_space<vmem>>, %arg3: memref<1x32xf32, #tpu.memory_space<vmem>>, %arg4: memref<48x32xbf16, #tpu.memory_space<vmem>>) attributes {dimension_semantics = [#tpu.dimension_semantics<parallel>], iteration_bounds = array<i64: 1>, scalar_prefetch = 0 : i64, scratch_operands = 0 : i64, tpu.core_type = #tpu.core_type<tc>, window_params = [{transform_indices = @transform_0, window_bounds = array<i64: 48, 8>}, {pipeline_mode = #tpu.pipeline_mode<synchronous>, transform_indices = @transform_1, window_bounds = array<i64: 8, 32>}, {pipeline_mode = #tpu.pipeline_mode<synchronous>, transform_indices = @transform_2, window_bounds = array<i64: 1, 32>}, {transform_indices = @transform_3, window_bounds = array<i64: 48, 32>}]} {
    %c0 = arith.constant 0 : index
    %c0_0 = arith.constant 0 : index
    %0 = vector.load %arg1[%c0, %c0_0] : memref<48x8xf32, #tpu.memory_space<vmem>>, vector<48x8xf32>
    %c0_1 = arith.constant 0 : index
    %c0_2 = arith.constant 0 : index
    %1 = vector.load %arg2[%c0_1, %c0_2] : memref<8x32xf32, #tpu.memory_space<vmem>>, vector<8x32xf32>
    %c0_3 = arith.constant 0 : index
    %c0_4 = arith.constant 0 : index
    %2 = vector.load %arg3[%c0_3, %c0_4] : memref<1x32xf32, #tpu.memory_space<vmem>>, vector<1x32xf32>
    %3 = vector.extract_strided_slice %0 {offsets = [0, 0], sizes = [48, 1], strides = [1, 1]} : vector<48x8xf32> to vector<48x1xf32>
    %4 = vector.extract_strided_slice %1 {offsets = [0, 0], sizes = [1, 32], strides = [1, 1]} : vector<8x32xf32> to vector<1x32xf32>
    %5 = vector.broadcast %3 : vector<48x1xf32> to vector<48x32xf32>
    %6 = vector.broadcast %4 : vector<1x32xf32> to vector<48x32xf32>
    %7 = arith.mulf %5, %6 : vector<48x32xf32>
    %8 = vector.broadcast %2 : vector<1x32xf32> to vector<48x32xf32>
    %9 = arith.addf %8, %7 : vector<48x32xf32>
    %10 = vector.extract_strided_slice %0 {offsets = [0, 1], sizes = [48, 1], strides = [1, 1]} : vector<48x8xf32> to vector<48x1xf32>
    %11 = vector.extract_strided_slice %1 {offsets = [1, 0], sizes = [1, 32], strides = [1, 1]} : vector<8x32xf32> to vector<1x32xf32>
    %12 = vector.broadcast %10 : vector<48x1xf32> to vector<48x32xf32>
    %13 = vector.broadcast %11 : vector<1x32xf32> to vector<48x32xf32>
    %14 = arith.mulf %12, %13 : vector<48x32xf32>
    %15 = arith.addf %9, %14 : vector<48x32xf32>
    %16 = vector.extract_strided_slice %0 {offsets = [0, 2], sizes = [48, 1], strides = [1, 1]} : vector<48x8xf32> to vector<48x1xf32>
    %17 = vector.extract_strided_slice %1 {offsets = [2, 0], sizes = [1, 32], strides = [1, 1]} : vector<8x32xf32> to vector<1x32xf32>
    %18 = vector.broadcast %16 : vector<48x1xf32> to vector<48x32xf32>
    %19 = vector.broadcast %17 : vector<1x32xf32> to vector<48x32xf32>
    %20 = arith.mulf %18, %19 : vector<48x32xf32>
    %21 = arith.addf %15, %20 : vector<48x32xf32>
    %22 = vector.extract_strided_slice %0 {offsets = [0, 3], sizes = [48, 1], strides = [1, 1]} : vector<48x8xf32> to vector<48x1xf32>
    %23 = vector.extract_strided_slice %1 {offsets = [3, 0], sizes = [1, 32], strides = [1, 1]} : vector<8x32xf32> to vector<1x32xf32>
    %24 = vector.broadcast %22 : vector<48x1xf32> to vector<48x32xf32>
    %25 = vector.broadcast %23 : vector<1x32xf32> to vector<48x32xf32>
    %26 = arith.mulf %24, %25 : vector<48x32xf32>
    %27 = arith.addf %21, %26 : vector<48x32xf32>
    %28 = vector.extract_strided_slice %0 {offsets = [0, 4], sizes = [48, 1], strides = [1, 1]} : vector<48x8xf32> to vector<48x1xf32>
    %29 = vector.extract_strided_slice %1 {offsets = [4, 0], sizes = [1, 32], strides = [1, 1]} : vector<8x32xf32> to vector<1x32xf32>
    %30 = vector.broadcast %28 : vector<48x1xf32> to vector<48x32xf32>
    %31 = vector.broadcast %29 : vector<1x32xf32> to vector<48x32xf32>
    %32 = arith.mulf %30, %31 : vector<48x32xf32>
    %33 = arith.addf %27, %32 : vector<48x32xf32>
    %cst = arith.constant 0.000000e+00 : f32
    %34 = vector.broadcast %cst : f32 to vector<48x32xf32>
    %35 = arith.cmpf ogt, %33, %34 : vector<48x32xf32>
    %cst_5 = arith.constant 1.000000e-01 : f32
    %36 = vector.broadcast %cst_5 : f32 to vector<48x32xf32>
    %37 = arith.mulf %36, %33 : vector<48x32xf32>
    %38 = arith.select %35, %33, %37 : vector<48x32xi1>, vector<48x32xf32>
    %39 = arith.truncf %38 : vector<48x32xf32> to vector<48x32xbf16>
    %c0_6 = arith.constant 0 : index
    %c0_7 = arith.constant 0 : index
    %40 = vector.load %arg4[%c0_6, %c0_7] : memref<48x32xbf16, #tpu.memory_space<vmem>>, vector<48x32xbf16>
    tpu.vector_store %arg4[%c0_6, %c0_7], %39 {strides = array<i32>} : memref<48x32xbf16, #tpu.memory_space<vmem>>, vector<48x32xbf16>,
    return
  }
  func.func @transform_0(%arg0: i32) -> (i32, i32) {
    %c0_i32 = arith.constant 0 : i32
    %c0_i32_0 = arith.constant 0 : i32
    return %arg0, %c0_i32 : i32, i32
  }
  func.func @transform_1(%arg0: i32) -> (i32, i32) {
    %c0_i32 = arith.constant 0 : i32
    %c0_i32_0 = arith.constant 0 : i32
    %c0_i32_1 = arith.constant 0 : i32
    return %c0_i32, %c0_i32_0 : i32, i32
  }
  func.func @transform_2(%arg0: i32) -> (i32, i32) {
    %c0_i32 = arith.constant 0 : i32
    %c0_i32_0 = arith.constant 0 : i32
    %c0_i32_1 = arith.constant 0 : i32
    return %c0_i32, %c0_i32_0 : i32, i32
  }
  func.func @transform_3(%arg0: i32) -> (i32, i32) {
    %c0_i32 = arith.constant 0 : i32
    %c0_i32_0 = arith.constant 0 : i32
    return %arg0, %c0_i32 : i32, i32
  }
}

</mosaic_0001>

<llo_original>
// kernel: tpu_custom_call.1
$region0: #{tpu_custom_call.1}
  #allocation0 [shape = 'u32[]', space=smem, size = 0x4, offset = 0x4, fixed_abs, tag = 'smem constant byte address 0x4 - core index']
  #allocation1 [shape = 'u32[144,128]{1,0:T(1,128)}', space=vmem, size = 0x12000, scoped, tag = 'internal scratch']
  %s0 = inlined_call_operand.vmem [shape: f32[48,8], index: 0, kind: input, shape index: {}]
  %s1 = inlined_call_operand.vmem [shape: f32[8,32], index: 1, kind: input, shape index: {}]
  %s2 = inlined_call_operand.vmem [shape: f32[1,32], index: 2, kind: input, shape index: {}]
  %s3 = inlined_call_operand.vmem [shape: bf16[48,32], index: 3, kind: output, shape index: {}]
  %s4 = sld [smem:[#allocation0]]
  $region22: #{tpu_custom_call.1} parent=0
    _
  %s6 = ssub.s32 1, %s4
  %s7 = scalar_select 0, %s6, %s4
  // Predicated region
  $region2: #{tpu_custom_call.1} parent=0 // pred_check
    _
  $region3: #{tpu_custom_call.1} parent=0 // pred_check_branch
    %9 = sbr.rel (0) target = $region5
  $region4: #{tpu_custom_call.1} parent=0 // pred_region
    _
  $region5: #{tpu_custom_call.1} parent=0 // pred_fallthru
    _
  // Predicated region
  $region6: #{tpu_custom_call.1} parent=0 // pred_check
    _
  $region7: #{tpu_custom_call.1} parent=0 // pred_check_branch
    %11 = sbr.rel (0) target = $region9
  $region8: #{tpu_custom_call.1} parent=0 // pred_region
    _
  $region9: #{tpu_custom_call.1} parent=0 // pred_fallthru
    _
  // Predicated region
  $region10: #{tpu_custom_call.1} parent=0 // pred_check
    _
  $region11: #{tpu_custom_call.1} parent=0 // pred_check_branch
    %13 = sbr.rel (0) target = $region13
  $region12: #{tpu_custom_call.1} parent=0 // pred_region
    _
  $region13: #{tpu_custom_call.1} parent=0 // pred_fallthru
    _
  %v14 = vld [vmem:[%s0] sm:$0xff]
  %v15 = vld [vmem:[%s0 + $0x8] sm:$0xff]
  %v16 = vld [vmem:[%s0 + $0x10] sm:$0xff]
  %v17 = vld [vmem:[%s0 + $0x18] sm:$0xff]
  %v18 = vld [vmem:[%s0 + $0x20] sm:$0xff]
  %v19 = vld [vmem:[%s0 + $0x28] sm:$0xff]
  %v20 = vld [vmem:[%s1] sm:$0xff]
  %v21 = vld [vmem:[%s2] sm:$0x1]
  %23 = vset.pattern.permute.xlu0 0
  %24 = vperm.xlu0 %23, %v14
  %v25 = vpop.permute.xlu0 %24
  %28 = vset.pattern.permute.xlu0 0
  %29 = vperm.xlu0 %28, %v15
  %v30 = vpop.permute.xlu0 %29
  %33 = vset.pattern.permute.xlu0 0
  %34 = vperm.xlu0 %33, %v16
  %v35 = vpop.permute.xlu0 %34
  %38 = vset.pattern.permute.xlu0 0
  %39 = vperm.xlu0 %38, %v17
  %v40 = vpop.permute.xlu0 %39
  %43 = vset.pattern.permute.xlu0 0
  %44 = vperm.xlu0 %43, %v18
  %v45 = vpop.permute.xlu0 %44
  %48 = vset.pattern.permute.xlu0 0
  %49 = vperm.xlu0 %48, %v19
  %v50 = vpop.permute.xlu0 %49
  %v52 = vlaneseq
  %v53 = vshrl.u32 %v52, 7
  %v54 = vsub.s32 0, %v53
  %v55 = vrot.slane %v20, %v54
  %v56 = vmul.f32 %v25, %v55
  %v57 = vmul.f32 %v30, %v55
  %v58 = vmul.f32 %v35, %v55
  %v59 = vmul.f32 %v40, %v55
  %v60 = vmul.f32 %v45, %v55
  %v61 = vmul.f32 %v50, %v55
  %v63 = vlaneseq
  %v64 = vshrl.u32 %v63, 7
  %v65 = vsub.s32 0, %v64
  %v66 = vrot.slane %v21, %v65
  %v68 = vadd.f32 %v66, %v56
  %v69 = vadd.f32 %v66, %v57
  %v70 = vadd.f32 %v66, %v58
  %v71 = vadd.f32 %v66, %v59
  %v72 = vadd.f32 %v66, %v60
  %v73 = vadd.f32 %v66, %v61
  %74 = vset.pattern.permute.xlu0 1
  %75 = vperm.xlu0 %74, %v14
  %v76 = vpop.permute.xlu0 %75
  %78 = vset.pattern.permute.xlu0 1
  %79 = vperm.xlu0 %78, %v15
  %v80 = vpop.permute.xlu0 %79
  %82 = vset.pattern.permute.xlu0 1
  %83 = vperm.xlu0 %82, %v16
  %v84 = vpop.permute.xlu0 %83
  %86 = vset.pattern.permute.xlu0 1
  %87 = vperm.xlu0 %86, %v17
  %v88 = vpop.permute.xlu0 %87
  %90 = vset.pattern.permute.xlu0 1
  %91 = vperm.xlu0 %90, %v18
  %v92 = vpop.permute.xlu0 %91
  %94 = vset.pattern.permute.xlu0 1
  %95 = vperm.xlu0 %94, %v19
  %v96 = vpop.permute.xlu0 %95
  %v98 = vlaneseq
  %v99 = vshrl.u32 %v98, 7
  %v100 = vsub.s32 1, %v99
  %v101 = vrot.slane %v20, %v100
  %v102 = vmul.f32 %v76, %v101
  %v103 = vmul.f32 %v80, %v101
  %v104 = vmul.f32 %v84, %v101
  %v105 = vmul.f32 %v88, %v101
  %v106 = vmul.f32 %v92, %v101
  %v107 = vmul.f32 %v96, %v101
  %v108 = vadd.f32 %v68, %v102
  %v109 = vadd.f32 %v69, %v103
  %v110 = vadd.f32 %v70, %v104
  %v111 = vadd.f32 %v71, %v105
  %v112 = vadd.f32 %v72, %v106
  %v113 = vadd.f32 %v73, %v107
  %114 = vset.pattern.permute.xlu0 2
  %115 = vperm.xlu0 %114, %v14
  %v116 = vpop.permute.xlu0 %115
  %118 = vset.pattern.permute.xlu0 2
  %119 = vperm.xlu0 %118, %v15
  %v120 = vpop.permute.xlu0 %119
  %122 = vset.pattern.permute.xlu0 2
  %123 = vperm.xlu0 %122, %v16
  %v124 = vpop.permute.xlu0 %123
  %126 = vset.pattern.permute.xlu0 2
  %127 = vperm.xlu0 %126, %v17
  %v128 = vpop.permute.xlu0 %127
  %130 = vset.pattern.permute.xlu0 2
  %131 = vperm.xlu0 %130, %v18
  %v132 = vpop.permute.xlu0 %131
  %134 = vset.pattern.permute.xlu0 2
  %135 = vperm.xlu0 %134, %v19
  %v136 = vpop.permute.xlu0 %135
  %v138 = vlaneseq
  %v139 = vshrl.u32 %v138, 7
  %v140 = vsub.s32 2, %v139
  %v141 = vrot.slane %v20, %v140
  %v142 = vmul.f32 %v116, %v141
  %v143 = vmul.f32 %v120, %v141
  %v144 = vmul.f32 %v124, %v141
  %v145 = vmul.f32 %v128, %v141
  %v146 = vmul.f32 %v132, %v141
  %v147 = vmul.f32 %v136, %v141
  %v148 = vadd.f32 %v108, %v142
  %v149 = vadd.f32 %v109, %v143
  %v150 = vadd.f32 %v110, %v144
  %v151 = vadd.f32 %v111, %v145
  %v152 = vadd.f32 %v112, %v146
  %v153 = vadd.f32 %v113, %v147
  %154 = vset.pattern.permute.xlu0 3
  %155 = vperm.xlu0 %154, %v14
  %v156 = vpop.permute.xlu0 %155
  %158 = vset.pattern.permute.xlu0 3
  %159 = vperm.xlu0 %158, %v15
  %v160 = vpop.permute.xlu0 %159
  %162 = vset.pattern.permute.xlu0 3
  %163 = vperm.xlu0 %162, %v16
  %v164 = vpop.permute.xlu0 %163
  %166 = vset.pattern.permute.xlu0 3
  %167 = vperm.xlu0 %166, %v17
  %v168 = vpop.permute.xlu0 %167
  %170 = vset.pattern.permute.xlu0 3
  %171 = vperm.xlu0 %170, %v18
  %v172 = vpop.permute.xlu0 %171
  %174 = vset.pattern.permute.xlu0 3
  %175 = vperm.xlu0 %174, %v19
  %v176 = vpop.permute.xlu0 %175
  %v178 = vlaneseq
  %v179 = vshrl.u32 %v178, 7
  %v180 = vsub.s32 3, %v179
  %v181 = vrot.slane %v20, %v180
  %v182 = vmul.f32 %v156, %v181
  %v183 = vmul.f32 %v160, %v181
  %v184 = vmul.f32 %v164, %v181
  %v185 = vmul.f32 %v168, %v181
  %v186 = vmul.f32 %v172, %v181
  %v187 = vmul.f32 %v176, %v181
  %v188 = vadd.f32 %v148, %v182
  %v189 = vadd.f32 %v149, %v183
  %v190 = vadd.f32 %v150, %v184
  %v191 = vadd.f32 %v151, %v185
  %v192 = vadd.f32 %v152, %v186
  %v193 = vadd.f32 %v153, %v187
  %194 = vset.pattern.permute.xlu0 4
  %195 = vperm.xlu0 %194, %v14
  %v196 = vpop.permute.xlu0 %195
  %198 = vset.pattern.permute.xlu0 4
  %199 = vperm.xlu0 %198, %v15
  %v200 = vpop.permute.xlu0 %199
  %202 = vset.pattern.permute.xlu0 4
  %203 = vperm.xlu0 %202, %v16
  %v204 = vpop.permute.xlu0 %203
  %206 = vset.pattern.permute.xlu0 4
  %207 = vperm.xlu0 %206, %v17
  %v208 = vpop.permute.xlu0 %207
  %210 = vset.pattern.permute.xlu0 4
  %211 = vperm.xlu0 %210, %v18
  %v212 = vpop.permute.xlu0 %211
  %214 = vset.pattern.permute.xlu0 4
  %215 = vperm.xlu0 %214, %v19
  %v216 = vpop.permute.xlu0 %215
  %v218 = vlaneseq
  %v219 = vshrl.u32 %v218, 7
  %v220 = vsub.s32 4, %v219
  %v221 = vrot.slane %v20, %v220
  %v222 = vmul.f32 %v196, %v221
  %v223 = vmul.f32 %v200, %v221
  %v224 = vmul.f32 %v204, %v221
  %v225 = vmul.f32 %v208, %v221
  %v226 = vmul.f32 %v212, %v221
  %v227 = vmul.f32 %v216, %v221
  %v228 = vadd.f32 %v188, %v222
  %v229 = vadd.f32 %v189, %v223
  %v230 = vadd.f32 %v190, %v224
  %v231 = vadd.f32 %v191, %v225
  %v232 = vadd.f32 %v192, %v226
  %v233 = vadd.f32 %v193, %v227
  %vm234 = vcmp.gt.f32.partialorder %v228, 0.0
  %vm235 = vcmp.gt.f32.partialorder %v229, 0.0
  %vm236 = vcmp.gt.f32.partialorder %v230, 0.0
  %vm237 = vcmp.gt.f32.partialorder %v231, 0.0
  %vm238 = vcmp.gt.f32.partialorder %v232, 0.0
  %vm239 = vcmp.gt.f32.partialorder %v233, 0.0
  %v240 = vmul.f32 %v228, 0.1
  %v241 = vmul.f32 %v229, 0.1
  %v242 = vmul.f32 %v230, 0.1
  %v243 = vmul.f32 %v231, 0.1
  %v244 = vmul.f32 %v232, 0.1
  %v245 = vmul.f32 %v233, 0.1
  %v246 = vsel %vm234, %v228, %v240
  %v247 = vsel %vm235, %v229, %v241
  %v248 = vsel %vm236, %v230, %v242
  %v249 = vsel %vm237, %v231, %v243
  %v250 = vsel %vm238, %v232, %v244
  %v251 = vsel %vm239, %v233, %v245
  %v252 = vpack.c.bf16 %v247, %v246
  %v253 = vpack.c.bf16 %v249, %v248
  %v254 = vpack.c.bf16 %v251, %v250
  %v258 = vunpack.c.l.b16 %v252
  %v259 = vunpack.c.h.b16 %v252
  %v260 = vunpack.c.l.b16 %v253
  %v261 = vunpack.c.h.b16 %v253
  %v262 = vunpack.c.l.b16 %v254
  %v263 = vunpack.c.h.b16 %v254
  %v264 = vpack.c.b16 %v258, %v258
  %v265 = vpack.c.b16 %v259, %v259
  %v266 = vpack.c.b16 %v260, %v260
  %v267 = vpack.c.b16 %v261, %v261
  %v268 = vpack.c.b16 %v262, %v262
  %v269 = vpack.c.b16 %v263, %v263
  %vm276 = vcmask 257024
  %277 = vst.msk [vmem:[%s3] sm:$0xf] %vm276, %v264
  %278 = vst.msk [vmem:[%s3 + $0x4] sm:$0xf] %vm276, %v265
  %279 = vst.msk [vmem:[%s3 + $0x8] sm:$0xf] %vm276, %v266
  %280 = vst.msk [vmem:[%s3 + $0xc] sm:$0xf] %vm276, %v267
  %281 = vst.msk [vmem:[%s3 + $0x10] sm:$0xf] %vm276, %v268
  %282 = vst.msk [vmem:[%s3 + $0x14] sm:$0xf] %vm276, %v269
  // Predicated region
  $region14: #{tpu_custom_call.1} parent=0 // pred_check
    _
  $region15: #{tpu_custom_call.1} parent=0 // pred_check_branch
    %284 = sbr.rel (0) target = $region17
  $region16: #{tpu_custom_call.1} parent=0 // pred_region
    _
  $region17: #{tpu_custom_call.1} parent=0 // pred_fallthru
    _
  // Predicated region
  $region18: #{tpu_custom_call.1} parent=0 // pred_check
    _
  $region19: #{tpu_custom_call.1} parent=0 // pred_check_branch
    %286 = sbr.rel (0) target = $region21
  $region20: #{tpu_custom_call.1} parent=0 // pred_region
    _
  $region21: #{tpu_custom_call.1} parent=0 // pred_fallthru
    _

</llo_original>
